<compile_context>
chip_gen: v6e
topology: v6e:2x2x1
jax: 0.10.0
libtpu: 0.0.40
codegen_flags: <defaults>
</compile_context>

<pallas_src>
import math
import jax
import jax.numpy as jnp
from jax.experimental import pallas as pl
from jax.experimental.pallas import tpu as pltpu


def _gelu(v):
    # Exact formula from the PyTorch GeLU module (tanh approximation), in f32.
    return 0.5 * v * (1.0 + jnp.tanh(v * 0.7978845608 * (1.0 + 0.044715 * v * v)))


def _round_up(a, b):
    return (a + b - 1) // b * b


def _full_fusion_kernel(x_ref, a_ref,
                        wx_ref, b123_ref,
                        w1b_ref, w2b_ref, w3b_ref,
                        w4a_ref, w4b_ref, w4c_ref, b4_ref,
                        o_ref):
    Hp = o_ref.shape[-1]
    x = x_ref[...]          # [tm, Dp]  compute dtype (bf16)
    al = a_ref[...]
    cdt = x.dtype

    # Fused x-side first layer: one [tm,Dp]x[Dp,3Hp] MXU matmul, f32 accumulate,
    # with all three first-layer biases folded in via a single [1,3Hp] add.
    s = jnp.dot(x, wx_ref[...], preferred_element_type=jnp.float32) + b123_ref[...]

    # Branch 1: compute x1 and immediately fold it into the second-layer
    # accumulator so the [tm,Hp] intermediate is dead before branch 2 starts.
    x1 = _gelu(s[:, :Hp]
               + jnp.dot(al, w1b_ref[...], preferred_element_type=jnp.float32))
    acc = jnp.dot(x1.astype(cdt), w4a_ref[...], preferred_element_type=jnp.float32)

    # Branch 2
    x2 = _gelu(s[:, Hp:2 * Hp]
               + jnp.dot(x - al, w2b_ref[...], preferred_element_type=jnp.float32))
    acc = acc + jnp.dot(x2.astype(cdt), w4b_ref[...],
                        preferred_element_type=jnp.float32)

    # Branch 3
    x3 = _gelu(s[:, 2 * Hp:]
               + jnp.dot(x * al, w3b_ref[...], preferred_element_type=jnp.float32))
    acc = acc + jnp.dot(x3.astype(cdt), w4c_ref[...],
                        preferred_element_type=jnp.float32)

    # dropout (eval) -> identity
    o_ref[...] = _gelu(acc + b4_ref[...]).astype(o_ref.dtype)


def full_fusion(x, align, params, *, tm=256, compute_dtype=jnp.bfloat16,
                vmem_limit_bytes=48 * 1024 * 1024):
    """x, align: [B, L, D] float32. Returns [B, L, H] float32."""
    B, L, D = x.shape
    H = params["b1"].shape[0]
    M = B * L

    # --- TPU-friendly padded sizes -------------------------------------------
    Dp = _round_up(D, 128)                 # lane-dense K for first layer
    Hp = _round_up(H, 128)                 # lane-dense N / K for second layer
    tm_eff = min(tm, _round_up(M, 16))     # 16: bf16 sublane packing
    M_pad = _round_up(M, tm_eff)           # keeps grid >= 1; for large M the
                                           # grid stays >1 for v7x megacore

    x2d = jnp.pad(x.reshape(M, D).astype(jnp.float32),
                  ((0, M_pad - M), (0, Dp - D))).astype(compute_dtype)
    a2d = jnp.pad(align.reshape(M, D).astype(jnp.float32),
                  ((0, M_pad - M), (0, Dp - D))).astype(compute_dtype)

    # --- host-side weight prep (weight_norm already folded in params) --------
    def pad2(w, r, c):
        return jnp.pad(w, ((0, r - w.shape[0]), (0, c - w.shape[1])))

    w1, w2, w3, w4 = params["w1"], params["w2"], params["w3"], params["w4"]
    # Each w{1,2,3} is [2D, H] in (in, out) layout: split x-half / other-half.
    w1a, w1b = pad2(w1[:D], Dp, Hp), pad2(w1[D:], Dp, Hp)
    w2a, w2b = pad2(w2[:D], Dp, Hp), pad2(w2[D:], Dp, Hp)
    w3a, w3b = pad2(w3[:D], Dp, Hp), pad2(w3[D:], Dp, Hp)
    wx_cat = jnp.concatenate([w1a, w2a, w3a], axis=1).astype(compute_dtype)
    w1b, w2b, w3b = (w.astype(compute_dtype) for w in (w1b, w2b, w3b))

    # w4 is [3H, H]; split into three [H, H] chunks, pad each to [Hp, Hp].
    w4a = pad2(w4[:H], Hp, Hp).astype(compute_dtype)
    w4b = pad2(w4[H:2 * H], Hp, Hp).astype(compute_dtype)
    w4c = pad2(w4[2 * H:], Hp, Hp).astype(compute_dtype)

    def padb(b):
        return jnp.pad(b, (0, Hp - H)).reshape(1, Hp).astype(jnp.float32)

    b123 = jnp.concatenate([padb(params["b1"]), padb(params["b2"]),
                            padb(params["b3"])], axis=1)       # [1, 3Hp] f32
    b4 = padb(params["b4"])                                    # [1, Hp]  f32

    # --- specs ----------------------------------------------------------------
    row_spec = pl.BlockSpec((tm_eff, Dp), lambda i: (i, 0))
    wx_spec = pl.BlockSpec((Dp, 3 * Hp), lambda i: (0, 0))
    wb_spec = pl.BlockSpec((Dp, Hp), lambda i: (0, 0))
    w4_spec = pl.BlockSpec((Hp, Hp), lambda i: (0, 0))
    b123_spec = pl.BlockSpec((1, 3 * Hp), lambda i: (0, 0))
    b4_spec = pl.BlockSpec((1, Hp), lambda i: (0, 0))
    out_spec = pl.BlockSpec((tm_eff, Hp), lambda i: (i, 0))
    # NOTE: the constant-index weight blocks are never re-DMA'd across the
    # grid; bf16 halves their resident footprint (matters on v7x's 64 MiB
    # VMEM).  Single-buffering them (pl.Buffered(1)) would reclaim a further
    # 2x if a future config becomes VMEM-bound.

    out2d = pl.pallas_call(
        _full_fusion_kernel,
        out_shape=jax.ShapeDtypeStruct((M_pad, Hp), jnp.float32),
        grid_spec=pltpu.PrefetchScalarGridSpec(
            num_scalar_prefetch=0,
            grid=(M_pad // tm_eff,),
            in_specs=[row_spec, row_spec,
                      wx_spec, b123_spec,
                      wb_spec, wb_spec, wb_spec,
                      w4_spec, w4_spec, w4_spec, b4_spec],
            out_specs=out_spec,
        ),
        compiler_params=pltpu.CompilerParams(
            dimension_semantics=("parallel",),
            vmem_limit_bytes=vmem_limit_bytes),
    )(x2d, a2d, wx_cat, b123, w1b, w2b, w3b, w4a, w4b, w4c, b4)

    return out2d[:M, :H].reshape(B, L, H)


def _init_weight_norm_linear(key, in_features, out_features, activations=True):
    """Mirror Linear.__init__: normal(std=sqrt(2/in)) weights, zero bias,
    wrapped in weight_norm (dim=0 over rows of the [out, in] weight)."""
    std = math.sqrt((2.0 if activations else 1.0) / in_features)
    v = std * jax.random.normal(key, (out_features, in_features), jnp.float32)
    row_norm = jnp.sqrt(jnp.sum(v * v, axis=1, keepdims=True))
    g = row_norm
    w_eff = g * v / row_norm            # [out, in]  (== v at init)
    b = jnp.zeros((out_features,), jnp.float32)
    return w_eff.T, b                   # transpose -> [in, out]


def init_full_fusion_params(key, input_size, hidden_size):
    k1, k2, k3, k4 = jax.random.split(key, 4)
    w1, b1 = _init_weight_norm_linear(k1, input_size * 2, hidden_size)
    w2, b2 = _init_weight_norm_linear(k2, input_size * 2, hidden_size)
    w3, b3 = _init_weight_norm_linear(k3, input_size * 2, hidden_size)
    w4, b4 = _init_weight_norm_linear(k4, hidden_size * 3, hidden_size)
    return dict(w1=w1, b1=b1, w2=w2, b2=b2, w3=w3, b3=b3, w4=w4, b4=b4)


def full_fusion_reference(x, align, params, compute_dtype=jnp.bfloat16):
    """Pure-JAX reference using the same bf16-operand / f32-accumulate scheme
    as the kernel (so the comparison isolates kernel correctness)."""
    cd = compute_dtype
    xc = x.astype(cd)
    ac = align.astype(cd)

    def lin(v, w, b):
        return jnp.dot(v.astype(cd), w.astype(cd),
                       preferred_element_type=jnp.float32) + b

    x1 = _gelu(lin(jnp.concatenate([xc, ac], -1), params["w1"], params["b1"]))
    x2 = _gelu(lin(jnp.concatenate([xc, xc - ac], -1), params["w2"], params["b2"]))
    x3 = _gelu(lin(jnp.concatenate([xc, xc * ac], -1), params["w3"], params["b3"]))
    cat = jnp.concatenate([x1, x2, x3], -1)
    return _gelu(lin(cat, params["w4"], params["b4"]))


if __name__ == "__main__":
    key = jax.random.PRNGKey(0)
    kx, ka, kp = jax.random.split(key, 3)

    B, L, D, H = 2, 8, 32, 32   # batch, seq, input_size, hidden_size
    x = jax.random.normal(kx, (B, L, D), jnp.float32)
    align = jax.random.normal(ka, (B, L, D), jnp.float32)
    params = init_full_fusion_params(kp, D, H)

    out = full_fusion(x, align, params)
    out = jax.block_until_ready(out)

    ref = full_fusion_reference(x, align, params)
    assert out.shape == (B, L, H)
    assert jnp.allclose(out, ref, atol=1e-2, rtol=1e-2), "mismatch vs reference"

    print("KERNEL_OK")
</pallas_src>

<mosaic_0001>
module attributes {stable_mosaic.version = 11 : i64} {
  func.func @_full_fusion_kernel(%arg0: i32, %arg1: memref<16x128xbf16, #tpu.memory_space<vmem>>, %arg2: memref<16x128xbf16, #tpu.memory_space<vmem>>, %arg3: memref<128x384xbf16, #tpu.memory_space<vmem>>, %arg4: memref<1x384xf32, #tpu.memory_space<vmem>>, %arg5: memref<128x128xbf16, #tpu.memory_space<vmem>>, %arg6: memref<128x128xbf16, #tpu.memory_space<vmem>>, %arg7: memref<128x128xbf16, #tpu.memory_space<vmem>>, %arg8: memref<128x128xbf16, #tpu.memory_space<vmem>>, %arg9: memref<128x128xbf16, #tpu.memory_space<vmem>>, %arg10: memref<128x128xbf16, #tpu.memory_space<vmem>>, %arg11: memref<1x128xf32, #tpu.memory_space<vmem>>, %arg12: memref<16x128xf32, #tpu.memory_space<vmem>>) attributes {dimension_semantics = [#tpu.dimension_semantics<parallel>], iteration_bounds = array<i64: 1>, scalar_prefetch = 0 : i64, scratch_operands = 0 : i64, tpu.core_type = #tpu.core_type<tc>, window_params = [{transform_indices = @transform_0, window_bounds = array<i64: 16, 128>}, {transform_indices = @transform_1, window_bounds = array<i64: 16, 128>}, {pipeline_mode = #tpu.pipeline_mode<synchronous>, transform_indices = @transform_2, window_bounds = array<i64: 128, 384>}, {pipeline_mode = #tpu.pipeline_mode<synchronous>, transform_indices = @transform_3, window_bounds = array<i64: 1, 384>}, {pipeline_mode = #tpu.pipeline_mode<synchronous>, transform_indices = @transform_4, window_bounds = array<i64: 128, 128>}, {pipeline_mode = #tpu.pipeline_mode<synchronous>, transform_indices = @transform_5, window_bounds = array<i64: 128, 128>}, {pipeline_mode = #tpu.pipeline_mode<synchronous>, transform_indices = @transform_6, window_bounds = array<i64: 128, 128>}, {pipeline_mode = #tpu.pipeline_mode<synchronous>, transform_indices = @transform_7, window_bounds = array<i64: 128, 128>}, {pipeline_mode = #tpu.pipeline_mode<synchronous>, transform_indices = @transform_8, window_bounds = array<i64: 128, 128>}, {pipeline_mode = #tpu.pipeline_mode<synchronous>, transform_indices = @transform_9, window_bounds = array<i64: 128, 128>}, {pipeline_mode = #tpu.pipeline_mode<synchronous>, transform_indices = @transform_10, window_bounds = array<i64: 1, 128>}, {transform_indices = @transform_11, window_bounds = array<i64: 16, 128>}]} {
    %c0 = arith.constant 0 : index
    %c0_0 = arith.constant 0 : index
    %0 = vector.load %arg1[%c0, %c0_0] : memref<16x128xbf16, #tpu.memory_space<vmem>>, vector<16x128xbf16>
    %c0_1 = arith.constant 0 : index
    %c0_2 = arith.constant 0 : index
    %1 = vector.load %arg2[%c0_1, %c0_2] : memref<16x128xbf16, #tpu.memory_space<vmem>>, vector<16x128xbf16>
    %c0_3 = arith.constant 0 : index
    %c0_4 = arith.constant 0 : index
    %2 = vector.load %arg3[%c0_3, %c0_4] : memref<128x384xbf16, #tpu.memory_space<vmem>>, vector<128x384xbf16>
    %cst = arith.constant dense<0.000000e+00> : vector<16x384xf32>
    %3 = tpu.matmul %0, %2, %cst {dimension_numbers = #tpu.dot_dimension_numbers<[1], [0], [0], [1], [0, 0, 1, 1], [], []>} : vector<16x128xbf16>, vector<128x384xbf16>, vector<16x384xf32> -> vector<16x384xf32>
    %c0_5 = arith.constant 0 : index
    %c0_6 = arith.constant 0 : index
    %4 = vector.load %arg4[%c0_5, %c0_6] : memref<1x384xf32, #tpu.memory_space<vmem>>, vector<1x384xf32>
    %5 = vector.broadcast %4 : vector<1x384xf32> to vector<16x384xf32>
    %6 = arith.addf %3, %5 : vector<16x384xf32>
    %7 = vector.extract_strided_slice %6 {offsets = [0, 0], sizes = [16, 128], strides = [1, 1]} : vector<16x384xf32> to vector<16x128xf32>
    %c0_7 = arith.constant 0 : index
    %c0_8 = arith.constant 0 : index
    %8 = vector.load %arg5[%c0_7, %c0_8] : memref<128x128xbf16, #tpu.memory_space<vmem>>, vector<128x128xbf16>
    %cst_9 = arith.constant dense<0.000000e+00> : vector<16x128xf32>
    %9 = tpu.matmul %1, %8, %cst_9 {dimension_numbers = #tpu.dot_dimension_numbers<[1], [0], [0], [1], [0, 0, 1, 1], [], []>} : vector<16x128xbf16>, vector<128x128xbf16>, vector<16x128xf32> -> vector<16x128xf32>
    %10 = arith.addf %7, %9 : vector<16x128xf32>
    %cst_10 = arith.constant 5.000000e-01 : f32
    %11 = vector.broadcast %cst_10 : f32 to vector<16x128xf32>
    %12 = arith.mulf %11, %10 : vector<16x128xf32>
    %cst_11 = arith.constant 0.797884583 : f32
    %13 = vector.broadcast %cst_11 : f32 to vector<16x128xf32>
    %14 = arith.mulf %10, %13 : vector<16x128xf32>
    %cst_12 = arith.constant 4.471500e-02 : f32
    %15 = vector.broadcast %cst_12 : f32 to vector<16x128xf32>
    %16 = arith.mulf %15, %10 : vector<16x128xf32>
    %17 = arith.mulf %16, %10 : vector<16x128xf32>
    %cst_13 = arith.constant 1.000000e+00 : f32
    %18 = vector.broadcast %cst_13 : f32 to vector<16x128xf32>
    %19 = arith.addf %18, %17 : vector<16x128xf32>
    %20 = arith.mulf %14, %19 : vector<16x128xf32>
    %21 = math.tanh %20 : vector<16x128xf32>
    %cst_14 = arith.constant 1.000000e+00 : f32
    %22 = vector.broadcast %cst_14 : f32 to vector<16x128xf32>
    %23 = arith.addf %22, %21 : vector<16x128xf32>
    %24 = arith.mulf %12, %23 : vector<16x128xf32>
    %25 = arith.truncf %24 : vector<16x128xf32> to vector<16x128xbf16>
    %c0_15 = arith.constant 0 : index
    %c0_16 = arith.constant 0 : index
    %26 = vector.load %arg8[%c0_15, %c0_16] : memref<128x128xbf16, #tpu.memory_space<vmem>>, vector<128x128xbf16>
    %cst_17 = arith.constant dense<0.000000e+00> : vector<16x128xf32>
    %27 = tpu.matmul %25, %26, %cst_17 {dimension_numbers = #tpu.dot_dimension_numbers<[1], [0], [0], [1], [0, 0, 1, 1], [], []>} : vector<16x128xbf16>, vector<128x128xbf16>, vector<16x128xf32> -> vector<16x128xf32>
    %28 = vector.extract_strided_slice %6 {offsets = [0, 128], sizes = [16, 128], strides = [1, 1]} : vector<16x384xf32> to vector<16x128xf32>
    %29 = arith.subf %0, %1 : vector<16x128xbf16>
    %c0_18 = arith.constant 0 : index
    %c0_19 = arith.constant 0 : index
    %30 = vector.load %arg6[%c0_18, %c0_19] : memref<128x128xbf16, #tpu.memory_space<vmem>>, vector<128x128xbf16>
    %cst_20 = arith.constant dense<0.000000e+00> : vector<16x128xf32>
    %31 = tpu.matmul %29, %30, %cst_20 {dimension_numbers = #tpu.dot_dimension_numbers<[1], [0], [0], [1], [0, 0, 1, 1], [], []>} : vector<16x128xbf16>, vector<128x128xbf16>, vector<16x128xf32> -> vector<16x128xf32>
    %32 = arith.addf %28, %31 : vector<16x128xf32>
    %cst_21 = arith.constant 5.000000e-01 : f32
    %33 = vector.broadcast %cst_21 : f32 to vector<16x128xf32>
    %34 = arith.mulf %33, %32 : vector<16x128xf32>
    %cst_22 = arith.constant 0.797884583 : f32
    %35 = vector.broadcast %cst_22 : f32 to vector<16x128xf32>
    %36 = arith.mulf %32, %35 : vector<16x128xf32>
    %cst_23 = arith.constant 4.471500e-02 : f32
    %37 = vector.broadcast %cst_23 : f32 to vector<16x128xf32>
    %38 = arith.mulf %37, %32 : vector<16x128xf32>
    %39 = arith.mulf %38, %32 : vector<16x128xf32>
    %cst_24 = arith.constant 1.000000e+00 : f32
    %40 = vector.broadcast %cst_24 : f32 to vector<16x128xf32>
    %41 = arith.addf %40, %39 : vector<16x128xf32>
    %42 = arith.mulf %36, %41 : vector<16x128xf32>
    %43 = math.tanh %42 : vector<16x128xf32>
    %cst_25 = arith.constant 1.000000e+00 : f32
    %44 = vector.broadcast %cst_25 : f32 to vector<16x128xf32>
    %45 = arith.addf %44, %43 : vector<16x128xf32>
    %46 = arith.mulf %34, %45 : vector<16x128xf32>
    %47 = arith.truncf %46 : vector<16x128xf32> to vector<16x128xbf16>
    %c0_26 = arith.constant 0 : index
    %c0_27 = arith.constant 0 : index
    %48 = vector.load %arg9[%c0_26, %c0_27] : memref<128x128xbf16, #tpu.memory_space<vmem>>, vector<128x128xbf16>
    %cst_28 = arith.constant dense<0.000000e+00> : vector<16x128xf32>
    %49 = tpu.matmul %47, %48, %cst_28 {dimension_numbers = #tpu.dot_dimension_numbers<[1], [0], [0], [1], [0, 0, 1, 1], [], []>} : vector<16x128xbf16>, vector<128x128xbf16>, vector<16x128xf32> -> vector<16x128xf32>
    %50 = arith.addf %27, %49 : vector<16x128xf32>
    %51 = vector.extract_strided_slice %6 {offsets = [0, 256], sizes = [16, 128], strides = [1, 1]} : vector<16x384xf32> to vector<16x128xf32>
    %52 = arith.mulf %0, %1 : vector<16x128xbf16>
    %c0_29 = arith.constant 0 : index
    %c0_30 = arith.constant 0 : index
    %53 = vector.load %arg7[%c0_29, %c0_30] : memref<128x128xbf16, #tpu.memory_space<vmem>>, vector<128x128xbf16>
    %cst_31 = arith.constant dense<0.000000e+00> : vector<16x128xf32>
    %54 = tpu.matmul %52, %53, %cst_31 {dimension_numbers = #tpu.dot_dimension_numbers<[1], [0], [0], [1], [0, 0, 1, 1], [], []>} : vector<16x128xbf16>, vector<128x128xbf16>, vector<16x128xf32> -> vector<16x128xf32>
    %55 = arith.addf %51, %54 : vector<16x128xf32>
    %cst_32 = arith.constant 5.000000e-01 : f32
    %56 = vector.broadcast %cst_32 : f32 to vector<16x128xf32>
    %57 = arith.mulf %56, %55 : vector<16x128xf32>
    %cst_33 = arith.constant 0.797884583 : f32
    %58 = vector.broadcast %cst_33 : f32 to vector<16x128xf32>
    %59 = arith.mulf %55, %58 : vector<16x128xf32>
    %cst_34 = arith.constant 4.471500e-02 : f32
    %60 = vector.broadcast %cst_34 : f32 to vector<16x128xf32>
    %61 = arith.mulf %60, %55 : vector<16x128xf32>
    %62 = arith.mulf %61, %55 : vector<16x128xf32>
    %cst_35 = arith.constant 1.000000e+00 : f32
    %63 = vector.broadcast %cst_35 : f32 to vector<16x128xf32>
    %64 = arith.addf %63, %62 : vector<16x128xf32>
    %65 = arith.mulf %59, %64 : vector<16x128xf32>
    %66 = math.tanh %65 : vector<16x128xf32>
    %cst_36 = arith.constant 1.000000e+00 : f32
    %67 = vector.broadcast %cst_36 : f32 to vector<16x128xf32>
    %68 = arith.addf %67, %66 : vector<16x128xf32>
    %69 = arith.mulf %57, %68 : vector<16x128xf32>
    %70 = arith.truncf %69 : vector<16x128xf32> to vector<16x128xbf16>
    %c0_37 = arith.constant 0 : index
    %c0_38 = arith.constant 0 : index
    %71 = vector.load %arg10[%c0_37, %c0_38] : memref<128x128xbf16, #tpu.memory_space<vmem>>, vector<128x128xbf16>
    %cst_39 = arith.constant dense<0.000000e+00> : vector<16x128xf32>
    %72 = tpu.matmul %70, %71, %cst_39 {dimension_numbers = #tpu.dot_dimension_numbers<[1], [0], [0], [1], [0, 0, 1, 1], [], []>} : vector<16x128xbf16>, vector<128x128xbf16>, vector<16x128xf32> -> vector<16x128xf32>
    %73 = arith.addf %50, %72 : vector<16x128xf32>
    %c0_40 = arith.constant 0 : index
    %c0_41 = arith.constant 0 : index
    %74 = vector.load %arg11[%c0_40, %c0_41] : memref<1x128xf32, #tpu.memory_space<vmem>>, vector<1x128xf32>
    %75 = vector.broadcast %74 : vector<1x128xf32> to vector<16x128xf32>
    %76 = arith.addf %73, %75 : vector<16x128xf32>
    %cst_42 = arith.constant 5.000000e-01 : f32
    %77 = vector.broadcast %cst_42 : f32 to vector<16x128xf32>
    %78 = arith.mulf %77, %76 : vector<16x128xf32>
    %cst_43 = arith.constant 0.797884583 : f32
    %79 = vector.broadcast %cst_43 : f32 to vector<16x128xf32>
    %80 = arith.mulf %76, %79 : vector<16x128xf32>
    %cst_44 = arith.constant 4.471500e-02 : f32
    %81 = vector.broadcast %cst_44 : f32 to vector<16x128xf32>
    %82 = arith.mulf %81, %76 : vector<16x128xf32>
    %83 = arith.mulf %82, %76 : vector<16x128xf32>
    %cst_45 = arith.constant 1.000000e+00 : f32
    %84 = vector.broadcast %cst_45 : f32 to vector<16x128xf32>
    %85 = arith.addf %84, %83 : vector<16x128xf32>
    %86 = arith.mulf %80, %85 : vector<16x128xf32>
    %87 = math.tanh %86 : vector<16x128xf32>
    %cst_46 = arith.constant 1.000000e+00 : f32
    %88 = vector.broadcast %cst_46 : f32 to vector<16x128xf32>
    %89 = arith.addf %88, %87 : vector<16x128xf32>
    %90 = arith.mulf %78, %89 : vector<16x128xf32>
    %c0_47 = arith.constant 0 : index
    %c0_48 = arith.constant 0 : index
    %91 = vector.load %arg12[%c0_47, %c0_48] : memref<16x128xf32, #tpu.memory_space<vmem>>, vector<16x128xf32>
    tpu.vector_store %arg12[%c0_47, %c0_48], %90 {strides = array<i32>} : memref<16x128xf32, #tpu.memory_space<vmem>>, vector<16x128xf32>,
    return
  }
  func.func @transform_0(%arg0: i32) -> (i32, i32) {
    %c0_i32 = arith.constant 0 : i32
    %c0_i32_0 = arith.constant 0 : i32
    return %arg0, %c0_i32 : i32, i32
  }
  func.func @transform_1(%arg0: i32) -> (i32, i32) {
    %c0_i32 = arith.constant 0 : i32
    %c0_i32_0 = arith.constant 0 : i32
    return %arg0, %c0_i32 : i32, i32
  }
  func.func @transform_2(%arg0: i32) -> (i32, i32) {
    %c0_i32 = arith.constant 0 : i32
    %c0_i32_0 = arith.constant 0 : i32
    %c0_i32_1 = arith.constant 0 : i32
    return %c0_i32, %c0_i32_0 : i32, i32
  }
  func.func @transform_3(%arg0: i32) -> (i32, i32) {
    %c0_i32 = arith.constant 0 : i32
    %c0_i32_0 = arith.constant 0 : i32
    %c0_i32_1 = arith.constant 0 : i32
    return %c0_i32, %c0_i32_0 : i32, i32
  }
  func.func @transform_4(%arg0: i32) -> (i32, i32) {
    %c0_i32 = arith.constant 0 : i32
    %c0_i32_0 = arith.constant 0 : i32
    %c0_i32_1 = arith.constant 0 : i32
    return %c0_i32, %c0_i32_0 : i32, i32
  }
  func.func @transform_5(%arg0: i32) -> (i32, i32) {
    %c0_i32 = arith.constant 0 : i32
    %c0_i32_0 = arith.constant 0 : i32
    %c0_i32_1 = arith.constant 0 : i32
    return %c0_i32, %c0_i32_0 : i32, i32
  }
  func.func @transform_6(%arg0: i32) -> (i32, i32) {
    %c0_i32 = arith.constant 0 : i32
    %c0_i32_0 = arith.constant 0 : i32
    %c0_i32_1 = arith.constant 0 : i32
    return %c0_i32, %c0_i32_0 : i32, i32
  }
  func.func @transform_7(%arg0: i32) -> (i32, i32) {
    %c0_i32 = arith.constant 0 : i32
    %c0_i32_0 = arith.constant 0 : i32
    %c0_i32_1 = arith.constant 0 : i32
    return %c0_i32, %c0_i32_0 : i32, i32
  }
  func.func @transform_8(%arg0: i32) -> (i32, i32) {
    %c0_i32 = arith.constant 0 : i32
    %c0_i32_0 = arith.constant 0 : i32
    %c0_i32_1 = arith.constant 0 : i32
    return %c0_i32, %c0_i32_0 : i32, i32
  }
  func.func @transform_9(%arg0: i32) -> (i32, i32) {
    %c0_i32 = arith.constant 0 : i32
    %c0_i32_0 = arith.constant 0 : i32
    %c0_i32_1 = arith.constant 0 : i32
    return %c0_i32, %c0_i32_0 : i32, i32
  }
  func.func @transform_10(%arg0: i32) -> (i32, i32) {
    %c0_i32 = arith.constant 0 : i32
    %c0_i32_0 = arith.constant 0 : i32
    %c0_i32_1 = arith.constant 0 : i32
    return %c0_i32, %c0_i32_0 : i32, i32
  }
  func.func @transform_11(%arg0: i32) -> (i32, i32) {
    %c0_i32 = arith.constant 0 : i32
    %c0_i32_0 = arith.constant 0 : i32
    return %arg0, %c0_i32 : i32, i32
  }
}

</mosaic_0001>

<llo_original>
// kernel: tpu_custom_call.1
$region0: #{tpu_custom_call.1}
  #allocation0 [shape = 'u32[]', space=smem, size = 0x4, offset = 0x4, fixed_abs, tag = 'smem constant byte address 0x4 - core index']
  #allocation1 [shape = 'u32[144,128]{1,0:T(1,128)}', space=vmem, size = 0x12000, scoped, tag = 'internal scratch']
  %s0 = inlined_call_operand.hbm [shape: bf16[16,128], index: 0, kind: input, shape index: {}]
  %s1 = inlined_call_operand.hbm [shape: bf16[16,128], index: 1, kind: input, shape index: {}]
  %s2 = inlined_call_operand.hbm [shape: bf16[128,384], index: 2, kind: input, shape index: {}]
  %s3 = inlined_call_operand.vmem [shape: f32[1,384], index: 3, kind: input, shape index: {}]
  %s4 = inlined_call_operand.hbm [shape: bf16[128,128], index: 4, kind: input, shape index: {}]
  %s5 = inlined_call_operand.hbm [shape: bf16[128,128], index: 5, kind: input, shape index: {}]
  %s6 = inlined_call_operand.hbm [shape: bf16[128,128], index: 6, kind: input, shape index: {}]
  %s7 = inlined_call_operand.hbm [shape: bf16[128,128], index: 7, kind: input, shape index: {}]
  %s8 = inlined_call_operand.hbm [shape: bf16[128,128], index: 8, kind: input, shape index: {}]
  %s9 = inlined_call_operand.hbm [shape: bf16[128,128], index: 9, kind: input, shape index: {}]
  %s10 = inlined_call_operand.vmem [shape: f32[1,128], index: 10, kind: input, shape index: {}]
  %s11 = inlined_call_operand.hbm [shape: f32[16,128], index: 11, kind: output, shape index: {}]
  %s12 = sld [smem:[#allocation0]]
  $region90: #{tpu_custom_call.1} parent=0
    _
  %s14 = ssub.s32 1, %s12
  %s15 = scalar_select 0, %s14, %s12
  $region1: #{tpu_custom_call.1} parent=0
    #allocation2 [shape = 'u8[4096]{0}', space=vmem, size = 0x1000, scoped, tag = 'input window, operand 0, single buffered']
    #allocation3 [shape = 's32[1]{0}', space=sflag, size = 0x4, scoped, tag = 'scoped memory for tpu_custom_call.1']
    #allocation4 [shape = 's32[1]{0}', space=sflag, size = 0x4, scoped, tag = 'scoped memory for tpu_custom_call.1']
    #allocation5 [shape = 'u8[4096]{0}', space=vmem, size = 0x1000, scoped, tag = 'input window, operand 1, single buffered']
    #allocation6 [shape = 's32[1]{0}', space=sflag, size = 0x4, scoped, tag = 'scoped memory for tpu_custom_call.1']
    #allocation7 [shape = 'u8[98304]{0}', space=vmem, size = 0x18000, scoped, tag = 'input window, operand 2, single buffered']
    #allocation8 [shape = 'u8[32768]{0}', space=vmem, size = 0x8000, scoped, tag = 'input window, operand 4, single buffered']
    #allocation9 [shape = 's32[1]{0}', space=sflag, size = 0x4, scoped, tag = 'scoped memory for tpu_custom_call.1']
    #allocation10 [shape = 'u8[32768]{0}', space=vmem, size = 0x8000, scoped, tag = 'input window, operand 5, single buffered']
    #allocation11 [shape = 'u8[32768]{0}', space=vmem, size = 0x8000, scoped, tag = 'input window, operand 6, single buffered']
    #allocation12 [shape = 's32[1]{0}', space=sflag, size = 0x4, scoped, tag = 'scoped memory for tpu_custom_call.1']
    #allocation13 [shape = 'u8[32768]{0}', space=vmem, size = 0x8000, scoped, tag = 'input window, operand 7, single buffered']
    #allocation14 [shape = 'u8[32768]{0}', space=vmem, size = 0x8000, scoped, tag = 'input window, operand 8, single buffered']
    #allocation15 [shape = 's32[1]{0}', space=sflag, size = 0x4, scoped, tag = 'scoped memory for tpu_custom_call.1']
    #allocation16 [shape = 'u8[32768]{0}', space=vmem, size = 0x8000, scoped, tag = 'input window, operand 9, single buffered']
    #allocation17 [shape = 'u8[8192]{0}', space=vmem, size = 0x2000, scoped, tag = 'output window, operand 0, single buffered']
    %16 = vsyncpa [#allocation3], 0
    %17 = vsyncpa [#allocation6], 0
    %18 = vsyncpa [#allocation9], 0
    %19 = vsyncpa [#allocation12], 0
    %20 = vsyncpa [#allocation15], 0
    %21 = vsyncpa [#allocation4], 0
    // Predicated region
    $region2: #{tpu_custom_call.1} parent=1 // pred_check
      _
    $region3: #{tpu_custom_call.1} parent=1 // pred_check_branch
      %23 = sbr.rel (0) target = $region5
    $region4: #{tpu_custom_call.1} parent=1 // pred_region
      %s25 = ssub.s32 128, 128
      %26 = vsyncadd [#allocation3], %s25
      %s27 = sshll.u32 [#allocation2], 4
      %s28 = int_to_ptr.vmem [resolvable:$true] %s27
      %33 = dma.hbm_to_vmem [thread:$0]  %s0, 128, %s28, [#allocation3], 64, 64, 4
    $region5: #{tpu_custom_call.1} parent=1 // pred_fallthru
      _
    // Predicated region
    $region6: #{tpu_custom_call.1} parent=1 // pred_check
      _
    $region7: #{tpu_custom_call.1} parent=1 // pred_check_branch
      %35 = sbr.rel (0) target = $region9
    $region8: #{tpu_custom_call.1} parent=1 // pred_region
      %s37 = ssub.s32 128, 128
      %38 = vsyncadd [#allocation6], %s37
      %s39 = sshll.u32 [#allocation5], 4
      %s40 = int_to_ptr.vmem [resolvable:$true] %s39
      %45 = dma.hbm_to_vmem [thread:$0]  %s1, 128, %s40, [#allocation6], 64, 64, 4
    $region9: #{tpu_custom_call.1} parent=1 // pred_fallthru
      _
    // Predicated region
    $region10: #{tpu_custom_call.1} parent=1 // pred_check
      _
    $region11: #{tpu_custom_call.1} parent=1 // pred_check_branch
      %47 = sbr.rel (0) target = $region13
    $region12: #{tpu_custom_call.1} parent=1 // pred_region
      %s49 = ssub.s32 3072, 3072
      %50 = vsyncadd [#allocation6], %s49
      %s51 = sshll.u32 [#allocation7], 4
      %s52 = int_to_ptr.vmem [resolvable:$true] %s51
      %57 = dma.hbm_to_vmem [thread:$0]  %s2, 3072, %s52, [#allocation6], 192, 192, 12
    $region13: #{tpu_custom_call.1} parent=1 // pred_fallthru
      _
    // Predicated region
    $region14: #{tpu_custom_call.1} parent=1 // pred_check
      _
    $region15: #{tpu_custom_call.1} parent=1 // pred_check_branch
      %59 = sbr.rel (0) target = $region17
    $region16: #{tpu_custom_call.1} parent=1 // pred_region
      _
    $region17: #{tpu_custom_call.1} parent=1 // pred_fallthru
      _
    // Predicated region
    $region18: #{tpu_custom_call.1} parent=1 // pred_check
      _
    $region19: #{tpu_custom_call.1} parent=1 // pred_check_branch
      %61 = sbr.rel (0) target = $region21
    $region20: #{tpu_custom_call.1} parent=1 // pred_region
      %s63 = ssub.s32 1024, 1024
      %64 = vsyncadd [#allocation9], %s63
      %s65 = sshll.u32 [#allocation8], 4
      %s66 = int_to_ptr.vmem [resolvable:$true] %s65
      %71 = dma.hbm_to_vmem [thread:$0]  %s4, 1024, %s66, [#allocation9], 64, 64, 4
    $region21: #{tpu_custom_call.1} parent=1 // pred_fallthru
      _
    // Predicated region
    $region22: #{tpu_custom_call.1} parent=1 // pred_check
      _
    $region23: #{tpu_custom_call.1} parent=1 // pred_check_branch
      %73 = sbr.rel (0) target = $region25
    $region24: #{tpu_custom_call.1} parent=1 // pred_region
      %s75 = ssub.s32 1024, 1024
      %76 = vsyncadd [#allocation9], %s75
      %s77 = sshll.u32 [#allocation10], 4
      %s78 = int_to_ptr.vmem [resolvable:$true] %s77
      %83 = dma.hbm_to_vmem [thread:$0]  %s5, 1024, %s78, [#allocation9], 64, 64, 4
    $region25: #{tpu_custom_call.1} parent=1 // pred_fallthru
      _
    // Predicated region
    $region26: #{tpu_custom_call.1} parent=1 // pred_check
      _
    $region27: #{tpu_custom_call.1} parent=1 // pred_check_branch
      %85 = sbr.rel (0) target = $region29
    $region28: #{tpu_custom_call.1} parent=1 // pred_region
      %s87 = ssub.s32 1024, 1024
      %88 = vsyncadd [#allocation12], %s87
      %s89 = sshll.u32 [#allocation11], 4
      %s90 = int_to_ptr.vmem [resolvable:$true] %s89
      %95 = dma.hbm_to_vmem [thread:$0]  %s6, 1024, %s90, [#allocation12], 64, 64, 4
    $region29: #{tpu_custom_call.1} parent=1 // pred_fallthru
      _
    // Predicated region
    $region30: #{tpu_custom_call.1} parent=1 // pred_check
      _
    $region31: #{tpu_custom_call.1} parent=1 // pred_check_branch
      %97 = sbr.rel (0) target = $region33
    $region32: #{tpu_custom_call.1} parent=1 // pred_region
      %s99 = ssub.s32 1024, 1024
      %100 = vsyncadd [#allocation12], %s99
      %s101 = sshll.u32 [#allocation13], 4
      %s102 = int_to_ptr.vmem [resolvable:$true] %s101
      %107 = dma.hbm_to_vmem [thread:$0]  %s7, 1024, %s102, [#allocation12], 64, 64, 4
    $region33: #{tpu_custom_call.1} parent=1 // pred_fallthru
      _
    // Predicated region
    $region34: #{tpu_custom_call.1} parent=1 // pred_check
      _
    $region35: #{tpu_custom_call.1} parent=1 // pred_check_branch
      %109 = sbr.rel (0) target = $region37
    $region36: #{tpu_custom_call.1} parent=1 // pred_region
      %s111 = ssub.s32 1024, 1024
      %112 = vsyncadd [#allocation15], %s111
      %s113 = sshll.u32 [#allocation14], 4
      %s114 = int_to_ptr.vmem [resolvable:$true] %s113
      %119 = dma.hbm_to_vmem [thread:$0]  %s8, 1024, %s114, [#allocation15], 64, 64, 4
    $region37: #{tpu_custom_call.1} parent=1 // pred_fallthru
      _
    // Predicated region
    $region38: #{tpu_custom_call.1} parent=1 // pred_check
      _
    $region39: #{tpu_custom_call.1} parent=1 // pred_check_branch
      %121 = sbr.rel (0) target = $region41
    $region40: #{tpu_custom_call.1} parent=1 // pred_region
      %s123 = ssub.s32 1024, 1024
      %124 = vsyncadd [#allocation15], %s123
      %s125 = sshll.u32 [#allocation16], 4
      %s126 = int_to_ptr.vmem [resolvable:$true] %s125
      %131 = dma.hbm_to_vmem [thread:$0]  %s9, 1024, %s126, [#allocation15], 64, 64, 4
    $region41: #{tpu_custom_call.1} parent=1 // pred_fallthru
      _
    // Predicated region
    $region42: #{tpu_custom_call.1} parent=1 // pred_check
      _
    $region43: #{tpu_custom_call.1} parent=1 // pred_check_branch
      %133 = sbr.rel (0) target = $region45
    $region44: #{tpu_custom_call.1} parent=1 // pred_region
      _
    $region45: #{tpu_custom_call.1} parent=1 // pred_fallthru
      _
    // Predicated region
    $region46: #{tpu_custom_call.1} parent=1 // pred_check
      _
    $region47: #{tpu_custom_call.1} parent=1 // pred_check_branch
      %135 = sbr.rel (0) target = $region49
    $region48: #{tpu_custom_call.1} parent=1 // pred_region
      %136 = dma.done [#allocation3], 128
    $region49: #{tpu_custom_call.1} parent=1 // pred_fallthru
      _
    // Predicated region
    $region50: #{tpu_custom_call.1} parent=1 // pred_check
      _
    $region51: #{tpu_custom_call.1} parent=1 // pred_check_branch
      %138 = sbr.rel (0) target = $region53
    $region52: #{tpu_custom_call.1} parent=1 // pred_region
      %139 = dma.done [#allocation6], 128
    $region53: #{tpu_custom_call.1} parent=1 // pred_fallthru
      _
    // Predicated region
    $region54: #{tpu_custom_call.1} parent=1 // pred_check
      _
    $region55: #{tpu_custom_call.1} parent=1 // pred_check_branch
      %141 = sbr.rel (0) target = $region57
    $region56: #{tpu_custom_call.1} parent=1 // pred_region
      %142 = dma.done [#allocation6], 3072
    $region57: #{tpu_custom_call.1} parent=1 // pred_fallthru
      _
    // Predicated region
    $region58: #{tpu_custom_call.1} parent=1 // pred_check
      _
    $region59: #{tpu_custom_call.1} parent=1 // pred_check_branch
      %144 = sbr.rel (0) target = $region61
    $region60: #{tpu_custom_call.1} parent=1 // pred_region
      %145 = dma.done [#allocation9], 1024
    $region61: #{tpu_custom_call.1} parent=1 // pred_fallthru
      _
    // Predicated region
    $region62: #{tpu_custom_call.1} parent=1 // pred_check
      _
    $region63: #{tpu_custom_call.1} parent=1 // pred_check_branch
      %147 = sbr.rel (0) target = $region65
    $region64: #{tpu_custom_call.1} parent=1 // pred_region
      %148 = dma.done [#allocation9], 1024
    $region65: #{tpu_custom_call.1} parent=1 // pred_fallthru
      _
    // Predicated region
    $region66: #{tpu_custom_call.1} parent=1 // pred_check
      _
    $region67: #{tpu_custom_call.1} parent=1 // pred_check_branch
      %150 = sbr.rel (0) target = $region69
    $region68: #{tpu_custom_call.1} parent=1 // pred_region
      %151 = dma.done [#allocation12], 1024
    $region69: #{tpu_custom_call.1} parent=1 // pred_fallthru
      _
    // Predicated region
    $region70: #{tpu_custom_call.1} parent=1 // pred_check
      _
    $region71: #{tpu_custom_call.1} parent=1 // pred_check_branch
      %153 = sbr.rel (0) target = $region73
    $region72: #{tpu_custom_call.1} parent=1 // pred_region
      %154 = dma.done [#allocation12], 1024
    $region73: #{tpu_custom_call.1} parent=1 // pred_fallthru
      _
    // Predicated region
    $region74: #{tpu_custom_call.1} parent=1 // pred_check
      _
    $region75: #{tpu_custom_call.1} parent=1 // pred_check_branch
      %156 = sbr.rel (0) target = $region77
    $region76: #{tpu_custom_call.1} parent=1 // pred_region
      %157 = dma.done [#allocation15], 1024
    $region77: #{tpu_custom_call.1} parent=1 // pred_fallthru
      _
    // Predicated region
    $region78: #{tpu_custom_call.1} parent=1 // pred_check
      _
    $region79: #{tpu_custom_call.1} parent=1 // pred_check_branch
      %159 = sbr.rel (0) target = $region81
    $region80: #{tpu_custom_call.1} parent=1 // pred_region
      %160 = dma.done [#allocation15], 1024
    $region81: #{tpu_custom_call.1} parent=1 // pred_fallthru
      _
    %v162 = vld [vmem:[#allocation2] sm:$0xf]
    %v163 = vld [vmem:[#allocation2 + $0x4] sm:$0xf]
    %v164 = vld [vmem:[#allocation5] sm:$0xf]
    %v165 = vld [vmem:[#allocation5 + $0x4] sm:$0xf]
    %v166 = vld [vmem:[#allocation7] sm:$0xff]
    %v167 = vld [vmem:[#allocation7 + $0x8] sm:$0xf]
    %v168 = vld [vmem:[#allocation7 + $0xc] sm:$0xff]
    %v169 = vld [vmem:[#allocation7 + $0x14] sm:$0xf]
    %v170 = vld [vmem:[#allocation7 + $0x18] sm:$0xff]
    %v171 = vld [vmem:[#allocation7 + $0x20] sm:$0xf]
    %v172 = vld [vmem:[#allocation7 + $0x24] sm:$0xff]
    %v173 = vld [vmem:[#allocation7 + $0x2c] sm:$0xf]
    %v174 = vld [vmem:[#allocation7 + $0x30] sm:$0xff]
    %v175 = vld [vmem:[#allocation7 + $0x38] sm:$0xf]
    %v176 = vld [vmem:[#allocation7 + $0x3c] sm:$0xff]
    %v177 = vld [vmem:[#allocation7 + $0x44] sm:$0xf]
    %v178 = vld [vmem:[#allocation7 + $0x48] sm:$0xff]
    %v179 = vld [vmem:[#allocation7 + $0x50] sm:$0xf]
    %v180 = vld [vmem:[#allocation7 + $0x54] sm:$0xff]
    %v181 = vld [vmem:[#allocation7 + $0x5c] sm:$0xf]
    %v182 = vld [vmem:[#allocation7 + $0x60] sm:$0xff]
    %v183 = vld [vmem:[#allocation7 + $0x68] sm:$0xf]
    %v184 = vld [vmem:[#allocation7 + $0x6c] sm:$0xff]
    %v185 = vld [vmem:[#allocation7 + $0x74] sm:$0xf]
    %v186 = vld [vmem:[#allocation7 + $0x78] sm:$0xff]
    %v187 = vld [vmem:[#allocation7 + $0x80] sm:$0xf]
    %v188 = vld [vmem:[#allocation7 + $0x84] sm:$0xff]
    %v189 = vld [vmem:[#allocation7 + $0x8c] sm:$0xf]
    %v190 = vld [vmem:[#allocation7 + $0x90] sm:$0xff]
    %v191 = vld [vmem:[#allocation7 + $0x98] sm:$0xf]
    %v192 = vld [vmem:[#allocation7 + $0x9c] sm:$0xff]
    %v193 = vld [vmem:[#allocation7 + $0xa4] sm:$0xf]
    %v194 = vld [vmem:[#allocation7 + $0xa8] sm:$0xff]
    %v195 = vld [vmem:[#allocation7 + $0xb0] sm:$0xf]
    %v196 = vld [vmem:[#allocation7 + $0xb4] sm:$0xff]
    %v197 = vld [vmem:[#allocation7 + $0xbc] sm:$0xf]
    %v198 = vld [vmem:[%s3] sm:$0x7]
    %v200 = vlaneseq
    %v201 = vshrl.u32 %v200, 7
    %v202 = vsub.s32 0, %v201
    %v203 = vrot.slane %v198, %v202
    %v204 = vlaneseq
    %v205 = vshrl.u32 %v204, 7
    %v206 = vsub.s32 1, %v205
    %v207 = vrot.slane %v198, %v206
    %v208 = vlaneseq
    %v209 = vshrl.u32 %v208, 7
    %v210 = vsub.s32 2, %v209
    %v211 = vrot.slane %v198, %v210
    %v217 = vunpack.c.l.b16 %v162
    %v218 = vunpack.c.l.b16 %v163
    %v219 = vpack.c.b16 %v218, %v217
    %v253 = vunpack.c.l.b16 %v166
    %v254 = vunpack.c.h.b16 %v166
    %v255 = vunpack.c.l.b16 %v167
    %v256 = vunpack.c.l.b16 %v168
    %v257 = vunpack.c.h.b16 %v168
    %v258 = vunpack.c.l.b16 %v169
    %v259 = vunpack.c.l.b16 %v170
    %v260 = vunpack.c.h.b16 %v170
    %v261 = vunpack.c.l.b16 %v171
    %v262 = vunpack.c.l.b16 %v172
    %v263 = vunpack.c.h.b16 %v172
    %v264 = vunpack.c.l.b16 %v173
    %v265 = vunpack.c.l.b16 %v174
    %v266 = vunpack.c.h.b16 %v174
    %v267 = vunpack.c.l.b16 %v175
    %v268 = vunpack.c.l.b16 %v176
    %v269 = vunpack.c.h.b16 %v176
    %v270 = vunpack.c.l.b16 %v177
    %v271 = vunpack.c.l.b16 %v178
    %v272 = vunpack.c.h.b16 %v178
    %v273 = vunpack.c.l.b16 %v179
    %v274 = vunpack.c.l.b16 %v180
    %v275 = vunpack.c.h.b16 %v180
    %v276 = vunpack.c.l.b16 %v181
    %v277 = vunpack.c.l.b16 %v182
    %v278 = vunpack.c.h.b16 %v182
    %v279 = vunpack.c.l.b16 %v183
    %v280 = vunpack.c.l.b16 %v184
    %v281 = vunpack.c.h.b16 %v184
    %v282 = vunpack.c.l.b16 %v185
    %v283 = vunpack.c.l.b16 %v186
    %v284 = vunpack.c.h.b16 %v186
    %v285 = vunpack.c.l.b16 %v187
    %v286 = vunpack.c.l.b16 %v188
    %v287 = vunpack.c.h.b16 %v188
    %v288 = vunpack.c.l.b16 %v189
    %v289 = vunpack.c.l.b16 %v190
    %v290 = vunpack.c.h.b16 %v190
    %v291 = vunpack.c.l.b16 %v191
    %v292 = vunpack.c.l.b16 %v192
    %v293 = vunpack.c.h.b16 %v192
    %v294 = vunpack.c.l.b16 %v193
    %v295 = vunpack.c.l.b16 %v194
    %v296 = vunpack.c.h.b16 %v194
    %v297 = vunpack.c.l.b16 %v195
    %v298 = vunpack.c.l.b16 %v196
    %v299 = vunpack.c.h.b16 %v196
    %v300 = vunpack.c.l.b16 %v197
    %v301 = vpack.c.b16 %v256, %v253
    %v302 = vpack.c.b16 %v257, %v254
    %v303 = vpack.c.b16 %v258, %v255
    %v304 = vpack.c.b16 %v262, %v259
    %v305 = vpack.c.b16 %v263, %v260
    %v306 = vpack.c.b16 %v264, %v261
    %v307 = vpack.c.b16 %v268, %v265
    %v308 = vpack.c.b16 %v269, %v266
    %v309 = vpack.c.b16 %v270, %v267
    %v310 = vpack.c.b16 %v274, %v271
    %v311 = vpack.c.b16 %v275, %v272
    %v312 = vpack.c.b16 %v276, %v273
    %v313 = vpack.c.b16 %v280, %v277
    %v314 = vpack.c.b16 %v281, %v278
    %v315 = vpack.c.b16 %v282, %v279
    %v316 = vpack.c.b16 %v286, %v283
    %v317 = vpack.c.b16 %v287, %v284
    %v318 = vpack.c.b16 %v288, %v285
    %v319 = vpack.c.b16 %v292, %v289
    %v320 = vpack.c.b16 %v293, %v290
    %v321 = vpack.c.b16 %v294, %v291
    %v322 = vpack.c.b16 %v298, %v295
    %v323 = vpack.c.b16 %v299, %v296
    %v324 = vpack.c.b16 %v300, %v297
    %349 = vmatprep.subr.bf16.mxu0 %v323
    %350 = vmatpush1.bf16.msra.mxu0 %v322
    %351 = vmatprep.subr.bf16.mxu0 %v320
    %352 = vmatpush1.bf16.msra.mxu0 %v319
    %353 = vmatprep.subr.bf16.mxu0 %v317
    %354 = vmatpush1.bf16.msra.mxu0 %v316
    %355 = vmatprep.subr.bf16.mxu0 %v314
    %356 = vmatpush1.bf16.msra.mxu0 %v313
    %357 = vmatprep.subr.bf16.mxu0 %v311
    %358 = vmatpush1.bf16.msra.mxu0 %v310
    %359 = vmatprep.subr.bf16.mxu0 %v308
    %360 = vmatpush1.bf16.msra.mxu0 %v307
    %361 = vmatprep.subr.bf16.mxu0 %v305
    %362 = vmatpush1.bf16.msra.mxu0 %v304
    %363 = vmatprep.subr.bf16.mxu0 %v302
    %364 = vmatpush1.bf16.msra.mxu0 %v301
    %365 = vmatprep.subr.bf16.mxu0 0
    %366 = vmatpush2.bf16.msra.mxu0 0
    %367 = vmatprep.subr.bf16.mxu0 0
    %368 = vmatpush2.bf16.msra.mxu0 0
    %369 = vmatprep.subr.bf16.mxu0 0
    %370 = vmatpush2.bf16.msra.mxu0 0
    %371 = vmatprep.subr.bf16.mxu0 0
    %372 = vmatpush2.bf16.msra.mxu0 0
    %373 = vmatprep.subr.bf16.mxu0 0
    %374 = vmatpush2.bf16.msra.mxu0 0
    %375 = vmatprep.subr.bf16.mxu0 0
    %376 = vmatpush2.bf16.msra.mxu0 0
    %377 = vmatprep.subr.bf16.mxu0 0
    %378 = vmatpush2.bf16.msra.mxu0 0
    %379 = vmatprep.subr.bf16.mxu0 0
    %380 = vmatpush2.bf16.msra.mxu0 0
    %381 = vmatprep.mubr.bf16.mxu0 0
    %382 = vmatmul.mubr.bf16.gmra.mxu0 %v219
    %v383 = vpop.f32.mrf.mxu0
    %v384 = vadd.f32 %v203, %v383
    %v385 = vpop.f32.mrf.mxu0
    %v386 = vadd.f32 %v207, %v385
    %v387 = vpop.f32.mrf.mxu0
    %v388 = vadd.f32 %v203, %v387
    %v389 = vpop.f32.mrf.mxu0
    %v390 = vadd.f32 %v207, %v389
    %391 = vdwg.mxu0
    %392 = vmatprep.subr.bf16.mxu0 0
    %393 = vmatpush1.bf16.msra.mxu0 %v324
    %394 = vmatprep.subr.bf16.mxu0 0
    %395 = vmatpush1.bf16.msra.mxu0 %v321
    %396 = vmatprep.subr.bf16.mxu0 0
    %397 = vmatpush1.bf16.msra.mxu0 %v318
    %398 = vmatprep.subr.bf16.mxu0 0
    %399 = vmatpush1.bf16.msra.mxu0 %v315
    %400 = vmatprep.subr.bf16.mxu0 0
    %401 = vmatpush1.bf16.msra.mxu0 %v312
    %402 = vmatprep.subr.bf16.mxu0 0
    %403 = vmatpush1.bf16.msra.mxu0 %v309
    %404 = vmatprep.subr.bf16.mxu0 0
    %405 = vmatpush1.bf16.msra.mxu0 %v306
    %406 = vmatprep.subr.bf16.mxu0 0
    %407 = vmatpush1.bf16.msra.mxu0 %v303
    %408 = vmatprep.subr.bf16.mxu0 0
    %409 = vmatpush2.bf16.msra.mxu0 0
    %410 = vmatprep.subr.bf16.mxu0 0
    %411 = vmatpush2.bf16.msra.mxu0 0
    %412 = vmatprep.subr.bf16.mxu0 0
    %413 = vmatpush2.bf16.msra.mxu0 0
    %414 = vmatprep.subr.bf16.mxu0 0
    %415 = vmatpush2.bf16.msra.mxu0 0
    %416 = vmatprep.subr.bf16.mxu0 0
    %417 = vmatpush2.bf16.msra.mxu0 0
    %418 = vmatprep.subr.bf16.mxu0 0
    %419 = vmatpush2.bf16.msra.mxu0 0
    %420 = vmatprep.subr.bf16.mxu0 0
    %421 = vmatpush2.bf16.msra.mxu0 0
    %422 = vmatprep.subr.bf16.mxu0 0
    %423 = vmatpush2.bf16.msra.mxu0 0
    %424 = vmatprep.mubr.bf16.mxu0 0
    %425 = vmatmul.mubr.bf16.gmra.mxu0 %v219
    %v426 = vpop.f32.mrf.mxu0
    %v427 = vadd.f32 %v211, %v426
    %v428 = vpop.f32.mrf.mxu0
    %v429 = vpop.f32.mrf.mxu0
    %v430 = vadd.f32 %v211, %v429
    %v431 = vpop.f32.mrf.mxu0
    %432 = vdwg.mxu0
    %v433 = vld [vmem:[#allocation8] sm:$0xf]
    %v434 = vld [vmem:[#allocation8 + $0x4] sm:$0xf]
    %v435 = vld [vmem:[#allocation8 + $0x8] sm:$0xf]
    %v436 = vld [vmem:[#allocation8 + $0xc] sm:$0xf]
    %v437 = vld [vmem:[#allocation8 + $0x10] sm:$0xf]
    %v438 = vld [vmem:[#allocation8 + $0x14] sm:$0xf]
    %v439 = vld [vmem:[#allocation8 + $0x18] sm:$0xf]
    %v440 = vld [vmem:[#allocation8 + $0x1c] sm:$0xf]
    %v441 = vld [vmem:[#allocation8 + $0x20] sm:$0xf]
    %v442 = vld [vmem:[#allocation8 + $0x24] sm:$0xf]
    %v443 = vld [vmem:[#allocation8 + $0x28] sm:$0xf]
    %v444 = vld [vmem:[#allocation8 + $0x2c] sm:$0xf]
    %v445 = vld [vmem:[#allocation8 + $0x30] sm:$0xf]
    %v446 = vld [vmem:[#allocation8 + $0x34] sm:$0xf]
    %v447 = vld [vmem:[#allocation8 + $0x38] sm:$0xf]
    %v448 = vld [vmem:[#allocation8 + $0x3c] sm:$0xf]
    %v451 = vunpack.c.l.b16 %v164
    %v452 = vunpack.c.l.b16 %v165
    %v453 = vpack.c.b16 %v452, %v451
    %v471 = vunpack.c.l.b16 %v433
    %v472 = vunpack.c.l.b16 %v434
    %v473 = vunpack.c.l.b16 %v435
    %v474 = vunpack.c.l.b16 %v436
    %v475 = vunpack.c.l.b16 %v437
    %v476 = vunpack.c.l.b16 %v438
    %v477 = vunpack.c.l.b16 %v439
    %v478 = vunpack.c.l.b16 %v440
    %v479 = vunpack.c.l.b16 %v441
    %v480 = vunpack.c.l.b16 %v442
    %v481 = vunpack.c.l.b16 %v443
    %v482 = vunpack.c.l.b16 %v444
    %v483 = vunpack.c.l.b16 %v445
    %v484 = vunpack.c.l.b16 %v446
    %v485 = vunpack.c.l.b16 %v447
    %v486 = vunpack.c.l.b16 %v448
    %v487 = vpack.c.b16 %v472, %v471
    %v488 = vpack.c.b16 %v474, %v473
    %v489 = vpack.c.b16 %v476, %v475
    %v490 = vpack.c.b16 %v478, %v477
    %v491 = vpack.c.b16 %v480, %v479
    %v492 = vpack.c.b16 %v482, %v481
    %v493 = vpack.c.b16 %v484, %v483
    %v494 = vpack.c.b16 %v486, %v485
    %503 = vmatprep.subr.bf16.mxu0 0
    %504 = vmatpush1.bf16.msra.mxu0 %v494
    %505 = vmatprep.subr.bf16.mxu0 0
    %506 = vmatpush1.bf16.msra.mxu0 %v493
    %507 = vmatprep.subr.bf16.mxu0 0
    %508 = vmatpush1.bf16.msra.mxu0 %v492
    %509 = vmatprep.subr.bf16.mxu0 0
    %510 = vmatpush1.bf16.msra.mxu0 %v491
    %511 = vmatprep.subr.bf16.mxu0 0
    %512 = vmatpush1.bf16.msra.mxu0 %v490
    %513 = vmatprep.subr.bf16.mxu0 0
    %514 = vmatpush1.bf16.msra.mxu0 %v489
    %515 = vmatprep.subr.bf16.mxu0 0
    %516 = vmatpush1.bf16.msra.mxu0 %v488
    %517 = vmatprep.subr.bf16.mxu0 0
    %518 = vmatpush1.bf16.msra.mxu0 %v487
    %519 = vmatprep.subr.bf16.mxu0 0
    %520 = vmatpush2.bf16.msra.mxu0 0
    %521 = vmatprep.subr.bf16.mxu0 0
    %522 = vmatpush2.bf16.msra.mxu0 0
    %523 = vmatprep.subr.bf16.mxu0 0
    %524 = vmatpush2.bf16.msra.mxu0 0
    %525 = vmatprep.subr.bf16.mxu0 0
    %526 = vmatpush2.bf16.msra.mxu0 0
    %527 = vmatprep.subr.bf16.mxu0 0
    %528 = vmatpush2.bf16.msra.mxu0 0
    %529 = vmatprep.subr.bf16.mxu0 0
    %530 = vmatpush2.bf16.msra.mxu0 0
    %531 = vmatprep.subr.bf16.mxu0 0
    %532 = vmatpush2.bf16.msra.mxu0 0
    %533 = vmatprep.subr.bf16.mxu0 0
    %534 = vmatpush2.bf16.msra.mxu0 0
    %535 = vmatprep.mubr.bf16.mxu0 0
    %536 = vmatmul.mubr.bf16.gmra.mxu0 %v453
    %v537 = vpop.f32.mrf.mxu0
    %v538 = vadd.f32 0.0, %v537
    %v539 = vpop.f32.mrf.mxu0
    %v540 = vpop.f32.mrf.mxu0
    %v541 = vadd.f32 0.0, %v540
    %v542 = vpop.f32.mrf.mxu0
    %543 = vdwg.mxu0
    %v544 = vadd.f32 %v384, %v538
    %v545 = vadd.f32 %v388, %v541
    %v546 = vmul.f32 %v544, 0.5
    %v547 = vmul.f32 %v545, 0.5
    %v548 = vmul.f32 %v544, 0.7978846
    %v549 = vmul.f32 %v545, 0.7978846
    %v550 = vmul.f32 %v544, 0.044715
    %v551 = vmul.f32 %v545, 0.044715
    %v552 = vmul.f32 %v550, %v544
    %v553 = vmul.f32 %v551, %v545
    %v554 = vadd.f32 %v552, 1.0
    %v555 = vadd.f32 %v553, 1.0
    %v556 = vmul.f32 %v548, %v554
    %v557 = vmul.f32 %v549, %v555
    %v558 = vtanh.pop %v556
    %v559 = vtanh.pop %v557
    %v560 = vadd.f32 %v558, 1.0
    %v561 = vadd.f32 %v559, 1.0
    %v562 = vmul.f32 %v546, %v560
    %v563 = vmul.f32 %v547, %v561
    %v564 = vpack.c.bf16 %v563, %v562
    %v565 = vld [vmem:[#allocation13] sm:$0xf]
    %v566 = vld [vmem:[#allocation13 + $0x4] sm:$0xf]
    %v567 = vld [vmem:[#allocation13 + $0x8] sm:$0xf]
    %v568 = vld [vmem:[#allocation13 + $0xc] sm:$0xf]
    %v569 = vld [vmem:[#allocation13 + $0x10] sm:$0xf]
    %v570 = vld [vmem:[#allocation13 + $0x14] sm:$0xf]
    %v571 = vld [vmem:[#allocation13 + $0x18] sm:$0xf]
    %v572 = vld [vmem:[#allocation13 + $0x1c] sm:$0xf]
    %v573 = vld [vmem:[#allocation13 + $0x20] sm:$0xf]
    %v574 = vld [vmem:[#allocation13 + $0x24] sm:$0xf]
    %v575 = vld [vmem:[#allocation13 + $0x28] sm:$0xf]
    %v576 = vld [vmem:[#allocation13 + $0x2c] sm:$0xf]
    %v577 = vld [vmem:[#allocation13 + $0x30] sm:$0xf]
    %v578 = vld [vmem:[#allocation13 + $0x34] sm:$0xf]
    %v579 = vld [vmem:[#allocation13 + $0x38] sm:$0xf]
    %v580 = vld [vmem:[#allocation13 + $0x3c] sm:$0xf]
    %v581 = vsub.bf16 %v162, %v164
    %v582 = vsub.bf16 %v163, %v165
    %v583 = vld [vmem:[#allocation10] sm:$0xf]
    %v584 = vld [vmem:[#allocation10 + $0x4] sm:$0xf]
    %v585 = vld [vmem:[#allocation10 + $0x8] sm:$0xf]
    %v586 = vld [vmem:[#allocation10 + $0xc] sm:$0xf]
    %v587 = vld [vmem:[#allocation10 + $0x10] sm:$0xf]
    %v588 = vld [vmem:[#allocation10 + $0x14] sm:$0xf]
    %v589 = vld [vmem:[#allocation10 + $0x18] sm:$0xf]
    %v590 = vld [vmem:[#allocation10 + $0x1c] sm:$0xf]
    %v591 = vld [vmem:[#allocation10 + $0x20] sm:$0xf]
    %v592 = vld [vmem:[#allocation10 + $0x24] sm:$0xf]
    %v593 = vld [vmem:[#allocation10 + $0x28] sm:$0xf]
    %v594 = vld [vmem:[#allocation10 + $0x2c] sm:$0xf]
    %v595 = vld [vmem:[#allocation10 + $0x30] sm:$0xf]
    %v596 = vld [vmem:[#allocation10 + $0x34] sm:$0xf]
    %v597 = vld [vmem:[#allocation10 + $0x38] sm:$0xf]
    %v598 = vld [vmem:[#allocation10 + $0x3c] sm:$0xf]
    %v601 = vunpack.c.l.b16 %v581
    %v602 = vunpack.c.l.b16 %v582
    %v603 = vpack.c.b16 %v602, %v601
    %v621 = vunpack.c.l.b16 %v583
    %v622 = vunpack.c.l.b16 %v584
    %v623 = vunpack.c.l.b16 %v585
    %v624 = vunpack.c.l.b16 %v586
    %v625 = vunpack.c.l.b16 %v587
    %v626 = vunpack.c.l.b16 %v588
    %v627 = vunpack.c.l.b16 %v589
    %v628 = vunpack.c.l.b16 %v590
    %v629 = vunpack.c.l.b16 %v591
    %v630 = vunpack.c.l.b16 %v592
    %v631 = vunpack.c.l.b16 %v593
    %v632 = vunpack.c.l.b16 %v594
    %v633 = vunpack.c.l.b16 %v595
    %v634 = vunpack.c.l.b16 %v596
    %v635 = vunpack.c.l.b16 %v597
    %v636 = vunpack.c.l.b16 %v598
    %v637 = vpack.c.b16 %v622, %v621
    %v638 = vpack.c.b16 %v624, %v623
    %v639 = vpack.c.b16 %v626, %v625
    %v640 = vpack.c.b16 %v628, %v627
    %v641 = vpack.c.b16 %v630, %v629
    %v642 = vpack.c.b16 %v632, %v631
    %v643 = vpack.c.b16 %v634, %v633
    %v644 = vpack.c.b16 %v636, %v635
    %653 = vmatprep.subr.bf16.mxu0 0
    %654 = vmatpush1.bf16.msra.mxu0 %v644
    %655 = vmatprep.subr.bf16.mxu0 0
    %656 = vmatpush1.bf16.msra.mxu0 %v643
    %657 = vmatprep.subr.bf16.mxu0 0
    %658 = vmatpush1.bf16.msra.mxu0 %v642
    %659 = vmatprep.subr.bf16.mxu0 0
    %660 = vmatpush1.bf16.msra.mxu0 %v641
    %661 = vmatprep.subr.bf16.mxu0 0
    %662 = vmatpush1.bf16.msra.mxu0 %v640
    %663 = vmatprep.subr.bf16.mxu0 0
    %664 = vmatpush1.bf16.msra.mxu0 %v639
    %665 = vmatprep.subr.bf16.mxu0 0
    %666 = vmatpush1.bf16.msra.mxu0 %v638
    %667 = vmatprep.subr.bf16.mxu0 0
    %668 = vmatpush1.bf16.msra.mxu0 %v637
    %669 = vmatprep.subr.bf16.mxu0 0
    %670 = vmatpush2.bf16.msra.mxu0 0
    %671 = vmatprep.subr.bf16.mxu0 0
    %672 = vmatpush2.bf16.msra.mxu0 0
    %673 = vmatprep.subr.bf16.mxu0 0
    %674 = vmatpush2.bf16.msra.mxu0 0
    %675 = vmatprep.subr.bf16.mxu0 0
    %676 = vmatpush2.bf16.msra.mxu0 0
    %677 = vmatprep.subr.bf16.mxu0 0
    %678 = vmatpush2.bf16.msra.mxu0 0
    %679 = vmatprep.subr.bf16.mxu0 0
    %680 = vmatpush2.bf16.msra.mxu0 0
    %681 = vmatprep.subr.bf16.mxu0 0
    %682 = vmatpush2.bf16.msra.mxu0 0
    %683 = vmatprep.subr.bf16.mxu0 0
    %684 = vmatpush2.bf16.msra.mxu0 0
    %685 = vmatprep.mubr.bf16.mxu0 0
    %686 = vmatmul.mubr.bf16.gmra.mxu0 %v603
    %v687 = vpop.f32.mrf.mxu0
    %v688 = vadd.f32 0.0, %v687
    %v689 = vpop.f32.mrf.mxu0
    %v690 = vpop.f32.mrf.mxu0
    %v691 = vadd.f32 0.0, %v690
    %v692 = vpop.f32.mrf.mxu0
    %693 = vdwg.mxu0
    %v694 = vadd.f32 %v386, %v688
    %v695 = vadd.f32 %v390, %v691
    %v696 = vmul.f32 %v694, 0.5
    %v697 = vmul.f32 %v695, 0.5
    %v698 = vmul.f32 %v694, 0.7978846
    %v699 = vmul.f32 %v695, 0.7978846
    %v700 = vmul.f32 %v694, 0.044715
    %v701 = vmul.f32 %v695, 0.044715
    %v702 = vmul.f32 %v700, %v694
    %v703 = vmul.f32 %v701, %v695
    %v704 = vadd.f32 %v702, 1.0
    %v705 = vadd.f32 %v703, 1.0
    %v706 = vmul.f32 %v698, %v704
    %v707 = vmul.f32 %v699, %v705
    %v708 = vtanh.pop %v706
    %v709 = vtanh.pop %v707
    %v710 = vadd.f32 %v708, 1.0
    %v711 = vadd.f32 %v709, 1.0
    %v712 = vmul.f32 %v696, %v710
    %v713 = vmul.f32 %v697, %v711
    %v714 = vpack.c.bf16 %v713, %v712
    %v715 = vld [vmem:[#allocation14] sm:$0xf]
    %v716 = vld [vmem:[#allocation14 + $0x4] sm:$0xf]
    %v717 = vld [vmem:[#allocation14 + $0x8] sm:$0xf]
    %v718 = vld [vmem:[#allocation14 + $0xc] sm:$0xf]
    %v719 = vld [vmem:[#allocation14 + $0x10] sm:$0xf]
    %v720 = vld [vmem:[#allocation14 + $0x14] sm:$0xf]
    %v721 = vld [vmem:[#allocation14 + $0x18] sm:$0xf]
    %v722 = vld [vmem:[#allocation14 + $0x1c] sm:$0xf]
    %v723 = vld [vmem:[#allocation14 + $0x20] sm:$0xf]
    %v724 = vld [vmem:[#allocation14 + $0x24] sm:$0xf]
    %v725 = vld [vmem:[#allocation14 + $0x28] sm:$0xf]
    %v726 = vld [vmem:[#allocation14 + $0x2c] sm:$0xf]
    %v727 = vld [vmem:[#allocation14 + $0x30] sm:$0xf]
    %v728 = vld [vmem:[#allocation14 + $0x34] sm:$0xf]
    %v729 = vld [vmem:[#allocation14 + $0x38] sm:$0xf]
    %v730 = vld [vmem:[#allocation14 + $0x3c] sm:$0xf]
    %v747 = vunpack.c.l.b16 %v715
    %v748 = vunpack.c.l.b16 %v716
    %v749 = vunpack.c.l.b16 %v717
    %v750 = vunpack.c.l.b16 %v718
    %v751 = vunpack.c.l.b16 %v719
    %v752 = vunpack.c.l.b16 %v720
    %v753 = vunpack.c.l.b16 %v721
    %v754 = vunpack.c.l.b16 %v722
    %v755 = vunpack.c.l.b16 %v723
    %v756 = vunpack.c.l.b16 %v724
    %v757 = vunpack.c.l.b16 %v725
    %v758 = vunpack.c.l.b16 %v726
    %v759 = vunpack.c.l.b16 %v727
    %v760 = vunpack.c.l.b16 %v728
    %v761 = vunpack.c.l.b16 %v729
    %v762 = vunpack.c.l.b16 %v730
    %v763 = vpack.c.b16 %v748, %v747
    %v764 = vpack.c.b16 %v750, %v749
    %v765 = vpack.c.b16 %v752, %v751
    %v766 = vpack.c.b16 %v754, %v753
    %v767 = vpack.c.b16 %v756, %v755
    %v768 = vpack.c.b16 %v758, %v757
    %v769 = vpack.c.b16 %v760, %v759
    %v770 = vpack.c.b16 %v762, %v761
    %779 = vmatprep.subr.bf16.mxu0 0
    %780 = vmatpush1.bf16.msra.mxu0 %v770
    %781 = vmatprep.subr.bf16.mxu0 0
    %782 = vmatpush1.bf16.msra.mxu0 %v769
    %783 = vmatprep.subr.bf16.mxu0 0
    %784 = vmatpush1.bf16.msra.mxu0 %v768
    %785 = vmatprep.subr.bf16.mxu0 0
    %786 = vmatpush1.bf16.msra.mxu0 %v767
    %787 = vmatprep.subr.bf16.mxu0 0
    %788 = vmatpush1.bf16.msra.mxu0 %v766
    %789 = vmatprep.subr.bf16.mxu0 0
    %790 = vmatpush1.bf16.msra.mxu0 %v765
    %791 = vmatprep.subr.bf16.mxu0 0
    %792 = vmatpush1.bf16.msra.mxu0 %v764
    %793 = vmatprep.subr.bf16.mxu0 0
    %794 = vmatpush1.bf16.msra.mxu0 %v763
    %795 = vmatprep.subr.bf16.mxu0 0
    %796 = vmatpush2.bf16.msra.mxu0 0
    %797 = vmatprep.subr.bf16.mxu0 0
    %798 = vmatpush2.bf16.msra.mxu0 0
    %799 = vmatprep.subr.bf16.mxu0 0
    %800 = vmatpush2.bf16.msra.mxu0 0
    %801 = vmatprep.subr.bf16.mxu0 0
    %802 = vmatpush2.bf16.msra.mxu0 0
    %803 = vmatprep.subr.bf16.mxu0 0
    %804 = vmatpush2.bf16.msra.mxu0 0
    %805 = vmatprep.subr.bf16.mxu0 0
    %806 = vmatpush2.bf16.msra.mxu0 0
    %807 = vmatprep.subr.bf16.mxu0 0
    %808 = vmatpush2.bf16.msra.mxu0 0
    %809 = vmatprep.subr.bf16.mxu0 0
    %810 = vmatpush2.bf16.msra.mxu0 0
    %811 = vmatprep.mubr.bf16.mxu0 0
    %812 = vmatmul.mubr.bf16.gmra.mxu0 %v714
    %v813 = vpop.f32.mrf.mxu0
    %v814 = vadd.f32 0.0, %v813
    %v815 = vpop.f32.mrf.mxu0
    %v816 = vpop.f32.mrf.mxu0
    %v817 = vadd.f32 0.0, %v816
    %v818 = vpop.f32.mrf.mxu0
    %819 = vdwg.mxu0
    %v836 = vunpack.c.l.b16 %v565
    %v837 = vunpack.c.l.b16 %v566
    %v838 = vunpack.c.l.b16 %v567
    %v839 = vunpack.c.l.b16 %v568
    %v840 = vunpack.c.l.b16 %v569
    %v841 = vunpack.c.l.b16 %v570
    %v842 = vunpack.c.l.b16 %v571
    %v843 = vunpack.c.l.b16 %v572
    %v844 = vunpack.c.l.b16 %v573
    %v845 = vunpack.c.l.b16 %v574
    %v846 = vunpack.c.l.b16 %v575
    %v847 = vunpack.c.l.b16 %v576
    %v848 = vunpack.c.l.b16 %v577
    %v849 = vunpack.c.l.b16 %v578
    %v850 = vunpack.c.l.b16 %v579
    %v851 = vunpack.c.l.b16 %v580
    %v852 = vpack.c.b16 %v837, %v836
    %v853 = vpack.c.b16 %v839, %v838
    %v854 = vpack.c.b16 %v841, %v840
    %v855 = vpack.c.b16 %v843, %v842
    %v856 = vpack.c.b16 %v845, %v844
    %v857 = vpack.c.b16 %v847, %v846
    %v858 = vpack.c.b16 %v849, %v848
    %v859 = vpack.c.b16 %v851, %v850
    %868 = vmatprep.subr.bf16.mxu0 0
    %869 = vmatpush1.bf16.msra.mxu0 %v859
    %870 = vmatprep.subr.bf16.mxu0 0
    %871 = vmatpush1.bf16.msra.mxu0 %v858
    %872 = vmatprep.subr.bf16.mxu0 0
    %873 = vmatpush1.bf16.msra.mxu0 %v857
    %874 = vmatprep.subr.bf16.mxu0 0
    %875 = vmatpush1.bf16.msra.mxu0 %v856
    %876 = vmatprep.subr.bf16.mxu0 0
    %877 = vmatpush1.bf16.msra.mxu0 %v855
    %878 = vmatprep.subr.bf16.mxu0 0
    %879 = vmatpush1.bf16.msra.mxu0 %v854
    %880 = vmatprep.subr.bf16.mxu0 0
    %881 = vmatpush1.bf16.msra.mxu0 %v853
    %882 = vmatprep.subr.bf16.mxu0 0
    %883 = vmatpush1.bf16.msra.mxu0 %v852
    %884 = vmatprep.subr.bf16.mxu0 0
    %885 = vmatpush2.bf16.msra.mxu0 0
    %886 = vmatprep.subr.bf16.mxu0 0
    %887 = vmatpush2.bf16.msra.mxu0 0
    %888 = vmatprep.subr.bf16.mxu0 0
    %889 = vmatpush2.bf16.msra.mxu0 0
    %890 = vmatprep.subr.bf16.mxu0 0
    %891 = vmatpush2.bf16.msra.mxu0 0
    %892 = vmatprep.subr.bf16.mxu0 0
    %893 = vmatpush2.bf16.msra.mxu0 0
    %894 = vmatprep.subr.bf16.mxu0 0
    %895 = vmatpush2.bf16.msra.mxu0 0
    %896 = vmatprep.subr.bf16.mxu0 0
    %897 = vmatpush2.bf16.msra.mxu0 0
    %898 = vmatprep.subr.bf16.mxu0 0
    %899 = vmatpush2.bf16.msra.mxu0 0
    %900 = vmatprep.mubr.bf16.mxu0 0
    %901 = vmatmul.mubr.bf16.gmra.mxu0 %v564
    %v902 = vpop.f32.mrf.mxu0
    %v903 = vadd.f32 %v814, %v902
    %v904 = vpop.f32.mrf.mxu0
    %v905 = vpop.f32.mrf.mxu0
    %v906 = vadd.f32 %v817, %v905
    %v907 = vpop.f32.mrf.mxu0
    %908 = vdwg.mxu0
    %v909 = vmul.bf16 %v162, %v164
    %v910 = vmul.bf16 %v163, %v165
    %v911 = vld [vmem:[#allocation11] sm:$0xf]
    %v912 = vld [vmem:[#allocation11 + $0x4] sm:$0xf]
    %v913 = vld [vmem:[#allocation11 + $0x8] sm:$0xf]
    %v914 = vld [vmem:[#allocation11 + $0xc] sm:$0xf]
    %v915 = vld [vmem:[#allocation11 + $0x10] sm:$0xf]
    %v916 = vld [vmem:[#allocation11 + $0x14] sm:$0xf]
    %v917 = vld [vmem:[#allocation11 + $0x18] sm:$0xf]
    %v918 = vld [vmem:[#allocation11 + $0x1c] sm:$0xf]
    %v919 = vld [vmem:[#allocation11 + $0x20] sm:$0xf]
    %v920 = vld [vmem:[#allocation11 + $0x24] sm:$0xf]
    %v921 = vld [vmem:[#allocation11 + $0x28] sm:$0xf]
    %v922 = vld [vmem:[#allocation11 + $0x2c] sm:$0xf]
    %v923 = vld [vmem:[#allocation11 + $0x30] sm:$0xf]
    %v924 = vld [vmem:[#allocation11 + $0x34] sm:$0xf]
    %v925 = vld [vmem:[#allocation11 + $0x38] sm:$0xf]
    %v926 = vld [vmem:[#allocation11 + $0x3c] sm:$0xf]
    %v929 = vunpack.c.l.b16 %v909
    %v930 = vunpack.c.l.b16 %v910
    %v931 = vpack.c.b16 %v930, %v929
    %v949 = vunpack.c.l.b16 %v911
    %v950 = vunpack.c.l.b16 %v912
    %v951 = vunpack.c.l.b16 %v913
    %v952 = vunpack.c.l.b16 %v914
    %v953 = vunpack.c.l.b16 %v915
    %v954 = vunpack.c.l.b16 %v916
    %v955 = vunpack.c.l.b16 %v917
    %v956 = vunpack.c.l.b16 %v918
    %v957 = vunpack.c.l.b16 %v919
    %v958 = vunpack.c.l.b16 %v920
    %v959 = vunpack.c.l.b16 %v921
    %v960 = vunpack.c.l.b16 %v922
    %v961 = vunpack.c.l.b16 %v923
    %v962 = vunpack.c.l.b16 %v924
    %v963 = vunpack.c.l.b16 %v925
    %v964 = vunpack.c.l.b16 %v926
    %v965 = vpack.c.b16 %v950, %v949
    %v966 = vpack.c.b16 %v952, %v951
    %v967 = vpack.c.b16 %v954, %v953
    %v968 = vpack.c.b16 %v956, %v955
    %v969 = vpack.c.b16 %v958, %v957
    %v970 = vpack.c.b16 %v960, %v959
    %v971 = vpack.c.b16 %v962, %v961
    %v972 = vpack.c.b16 %v964, %v963
    %981 = vmatprep.subr.bf16.mxu0 0
    %982 = vmatpush1.bf16.msra.mxu0 %v972
    %983 = vmatprep.subr.bf16.mxu0 0
    %984 = vmatpush1.bf16.msra.mxu0 %v971
    %985 = vmatprep.subr.bf16.mxu0 0
    %986 = vmatpush1.bf16.msra.mxu0 %v970
    %987 = vmatprep.subr.bf16.mxu0 0
    %988 = vmatpush1.bf16.msra.mxu0 %v969
    %989 = vmatprep.subr.bf16.mxu0 0
    %990 = vmatpush1.bf16.msra.mxu0 %v968
    %991 = vmatprep.subr.bf16.mxu0 0
    %992 = vmatpush1.bf16.msra.mxu0 %v967
    %993 = vmatprep.subr.bf16.mxu0 0
    %994 = vmatpush1.bf16.msra.mxu0 %v966
    %995 = vmatprep.subr.bf16.mxu0 0
    %996 = vmatpush1.bf16.msra.mxu0 %v965
    %997 = vmatprep.subr.bf16.mxu0 0
    %998 = vmatpush2.bf16.msra.mxu0 0
    %999 = vmatprep.subr.bf16.mxu0 0
    %1000 = vmatpush2.bf16.msra.mxu0 0
    %1001 = vmatprep.subr.bf16.mxu0 0
    %1002 = vmatpush2.bf16.msra.mxu0 0
    %1003 = vmatprep.subr.bf16.mxu0 0
    %1004 = vmatpush2.bf16.msra.mxu0 0
    %1005 = vmatprep.subr.bf16.mxu0 0
    %1006 = vmatpush2.bf16.msra.mxu0 0
    %1007 = vmatprep.subr.bf16.mxu0 0
    %1008 = vmatpush2.bf16.msra.mxu0 0
    %1009 = vmatprep.subr.bf16.mxu0 0
    %1010 = vmatpush2.bf16.msra.mxu0 0
    %1011 = vmatprep.subr.bf16.mxu0 0
    %1012 = vmatpush2.bf16.msra.mxu0 0
    %1013 = vmatprep.mubr.bf16.mxu0 0
    %1014 = vmatmul.mubr.bf16.gmra.mxu0 %v931
    %v1015 = vpop.f32.mrf.mxu0
    %v1016 = vadd.f32 0.0, %v1015
    %v1017 = vpop.f32.mrf.mxu0
    %v1018 = vpop.f32.mrf.mxu0
    %v1019 = vadd.f32 0.0, %v1018
    %v1020 = vpop.f32.mrf.mxu0
    %1021 = vdwg.mxu0
    %v1022 = vadd.f32 %v427, %v1016
    %v1023 = vadd.f32 %v430, %v1019
    %v1024 = vmul.f32 %v1022, 0.5
    %v1025 = vmul.f32 %v1023, 0.5
    %v1026 = vmul.f32 %v1022, 0.7978846
    %v1027 = vmul.f32 %v1023, 0.7978846
    %v1028 = vmul.f32 %v1022, 0.044715
    %v1029 = vmul.f32 %v1023, 0.044715
    %v1030 = vmul.f32 %v1028, %v1022
    %v1031 = vmul.f32 %v1029, %v1023
    %v1032 = vadd.f32 %v1030, 1.0
    %v1033 = vadd.f32 %v1031, 1.0
    %v1034 = vmul.f32 %v1026, %v1032
    %v1035 = vmul.f32 %v1027, %v1033
    %v1036 = vtanh.pop %v1034
    %v1037 = vtanh.pop %v1035
    %v1038 = vadd.f32 %v1036, 1.0
    %v1039 = vadd.f32 %v1037, 1.0
    %v1040 = vmul.f32 %v1024, %v1038
    %v1041 = vmul.f32 %v1025, %v1039
    %v1042 = vpack.c.bf16 %v1041, %v1040
    %v1043 = vld [vmem:[#allocation16] sm:$0xf]
    %v1044 = vld [vmem:[#allocation16 + $0x4] sm:$0xf]
    %v1045 = vld [vmem:[#allocation16 + $0x8] sm:$0xf]
    %v1046 = vld [vmem:[#allocation16 + $0xc] sm:$0xf]
    %v1047 = vld [vmem:[#allocation16 + $0x10] sm:$0xf]
    %v1048 = vld [vmem:[#allocation16 + $0x14] sm:$0xf]
    %v1049 = vld [vmem:[#allocation16 + $0x18] sm:$0xf]
    %v1050 = vld [vmem:[#allocation16 + $0x1c] sm:$0xf]
    %v1051 = vld [vmem:[#allocation16 + $0x20] sm:$0xf]
    %v1052 = vld [vmem:[#allocation16 + $0x24] sm:$0xf]
    %v1053 = vld [vmem:[#allocation16 + $0x28] sm:$0xf]
    %v1054 = vld [vmem:[#allocation16 + $0x2c] sm:$0xf]
    %v1055 = vld [vmem:[#allocation16 + $0x30] sm:$0xf]
    %v1056 = vld [vmem:[#allocation16 + $0x34] sm:$0xf]
    %v1057 = vld [vmem:[#allocation16 + $0x38] sm:$0xf]
    %v1058 = vld [vmem:[#allocation16 + $0x3c] sm:$0xf]
    %v1075 = vunpack.c.l.b16 %v1043
    %v1076 = vunpack.c.l.b16 %v1044
    %v1077 = vunpack.c.l.b16 %v1045
    %v1078 = vunpack.c.l.b16 %v1046
    %v1079 = vunpack.c.l.b16 %v1047
    %v1080 = vunpack.c.l.b16 %v1048
    %v1081 = vunpack.c.l.b16 %v1049
    %v1082 = vunpack.c.l.b16 %v1050
    %v1083 = vunpack.c.l.b16 %v1051
    %v1084 = vunpack.c.l.b16 %v1052
    %v1085 = vunpack.c.l.b16 %v1053
    %v1086 = vunpack.c.l.b16 %v1054
    %v1087 = vunpack.c.l.b16 %v1055
    %v1088 = vunpack.c.l.b16 %v1056
    %v1089 = vunpack.c.l.b16 %v1057
    %v1090 = vunpack.c.l.b16 %v1058
    %v1091 = vpack.c.b16 %v1076, %v1075
    %v1092 = vpack.c.b16 %v1078, %v1077
    %v1093 = vpack.c.b16 %v1080, %v1079
    %v1094 = vpack.c.b16 %v1082, %v1081
    %v1095 = vpack.c.b16 %v1084, %v1083
    %v1096 = vpack.c.b16 %v1086, %v1085
    %v1097 = vpack.c.b16 %v1088, %v1087
    %v1098 = vpack.c.b16 %v1090, %v1089
    %1107 = vmatprep.subr.bf16.mxu0 0
    %1108 = vmatpush1.bf16.msra.mxu0 %v1098
    %1109 = vmatprep.subr.bf16.mxu0 0
    %1110 = vmatpush1.bf16.msra.mxu0 %v1097
    %1111 = vmatprep.subr.bf16.mxu0 0
    %1112 = vmatpush1.bf16.msra.mxu0 %v1096
    %1113 = vmatprep.subr.bf16.mxu0 0
    %1114 = vmatpush1.bf16.msra.mxu0 %v1095
    %1115 = vmatprep.subr.bf16.mxu0 0
    %1116 = vmatpush1.bf16.msra.mxu0 %v1094
    %1117 = vmatprep.subr.bf16.mxu0 0
    %1118 = vmatpush1.bf16.msra.mxu0 %v1093
    %1119 = vmatprep.subr.bf16.mxu0 0
    %1120 = vmatpush1.bf16.msra.mxu0 %v1092
    %1121 = vmatprep.subr.bf16.mxu0 0
    %1122 = vmatpush1.bf16.msra.mxu0 %v1091
    %1123 = vmatprep.subr.bf16.mxu0 0
    %1124 = vmatpush2.bf16.msra.mxu0 0
    %1125 = vmatprep.subr.bf16.mxu0 0
    %1126 = vmatpush2.bf16.msra.mxu0 0
    %1127 = vmatprep.subr.bf16.mxu0 0
    %1128 = vmatpush2.bf16.msra.mxu0 0
    %1129 = vmatprep.subr.bf16.mxu0 0
    %1130 = vmatpush2.bf16.msra.mxu0 0
    %1131 = vmatprep.subr.bf16.mxu0 0
    %1132 = vmatpush2.bf16.msra.mxu0 0
    %1133 = vmatprep.subr.bf16.mxu0 0
    %1134 = vmatpush2.bf16.msra.mxu0 0
    %1135 = vmatprep.subr.bf16.mxu0 0
    %1136 = vmatpush2.bf16.msra.mxu0 0
    %1137 = vmatprep.subr.bf16.mxu0 0
    %1138 = vmatpush2.bf16.msra.mxu0 0
    %1139 = vmatprep.mubr.bf16.mxu0 0
    %1140 = vmatmul.mubr.bf16.gmra.mxu0 %v1042
    %v1141 = vpop.f32.mrf.mxu0
    %v1142 = vadd.f32 0.0, %v1141
    %v1143 = vpop.f32.mrf.mxu0
    %v1144 = vpop.f32.mrf.mxu0
    %v1145 = vadd.f32 0.0, %v1144
    %v1146 = vpop.f32.mrf.mxu0
    %1147 = vdwg.mxu0
    %v1148 = vadd.f32 %v903, %v1142
    %v1149 = vadd.f32 %v906, %v1145
    %v1150 = vld [vmem:[%s10] sm:$0x1]
    %v1152 = vlaneseq
    %v1153 = vshrl.u32 %v1152, 7
    %v1154 = vsub.s32 0, %v1153
    %v1155 = vrot.slane %v1150, %v1154
    %v1157 = vadd.f32 %v1148, %v1155
    %v1158 = vadd.f32 %v1149, %v1155
    %v1159 = vmul.f32 %v1157, 0.5
    %v1160 = vmul.f32 %v1158, 0.5
    %v1161 = vmul.f32 %v1157, 0.7978846
    %v1162 = vmul.f32 %v1158, 0.7978846
    %v1163 = vmul.f32 %v1157, 0.044715
    %v1164 = vmul.f32 %v1158, 0.044715
    %v1165 = vmul.f32 %v1163, %v1157
    %v1166 = vmul.f32 %v1164, %v1158
    %v1167 = vadd.f32 %v1165, 1.0
    %v1168 = vadd.f32 %v1166, 1.0
    %v1169 = vmul.f32 %v1161, %v1167
    %v1170 = vmul.f32 %v1162, %v1168
    %v1171 = vtanh.pop %v1169
    %v1172 = vtanh.pop %v1170
    %v1173 = vadd.f32 %v1171, 1.0
    %v1174 = vadd.f32 %v1172, 1.0
    %v1175 = vmul.f32 %v1159, %v1173
    %v1176 = vmul.f32 %v1160, %v1174
    %1177 = vst [vmem:[#allocation17] sm:$0xff] %v1175
    %1178 = vst [vmem:[#allocation17 + $0x8] sm:$0xff] %v1176
    // Predicated region
    $region82: #{tpu_custom_call.1} parent=1 // pred_check
      _
    $region83: #{tpu_custom_call.1} parent=1 // pred_check_branch
      %1180 = sbr.rel (0) target = $region85
    $region84: #{tpu_custom_call.1} parent=1 // pred_region
      %s1182 = ssub.s32 256, 256
      %1183 = vsyncadd [#allocation4], %s1182
      %s1184 = sshll.u32 [#allocation17], 4
      %s1185 = int_to_ptr.vmem [resolvable:$true] %s1184
      %1190 = dma.vmem_to_hbm [thread:$0]  %s1185, 256, %s11, [#allocation4], 128, 128, 8
    $region85: #{tpu_custom_call.1} parent=1 // pred_fallthru
      _
    // Predicated region
    $region86: #{tpu_custom_call.1} parent=1 // pred_check
      _
    $region87: #{tpu_custom_call.1} parent=1 // pred_check_branch
      %1192 = sbr.rel (0) target = $region89
    $region88: #{tpu_custom_call.1} parent=1 // pred_region
      %1193 = dma.done [#allocation4], 256
    $region89: #{tpu_custom_call.1} parent=1 // pred_fallthru
      _
    %1194 = vsyncpa [#allocation3], 1
    %1195 = vsyncpa [#allocation6], 1
    %1196 = vsyncpa [#allocation9], 1
    %1197 = vsyncpa [#allocation12], 1
    %1198 = vsyncpa [#allocation15], 1
    %1199 = vsyncpa [#allocation4], 1

</llo_original>
